<compile_context>
chip_gen: v5e
topology: v5e:2x2
jax: 0.10.0
libtpu: 0.0.40
codegen_flags: <defaults>
</compile_context>

<pallas_src>
import jax
import jax.numpy as jnp
from jax.experimental import pallas as pl
from jax.experimental.pallas import tpu as pltpu

# ---- problem sizes (small, consistent with an NCHW image classifier) ----
B, C, H, W = 2, 4, 16, 16        # input  [B, C, H, W]
F = 8                            # conv output channels
K = 3                            # conv kernel size (stride 1, padding 1)
NUM_CLASSES = 10

HP = H + 2                       # zero-padded height                = 18
HP_PAD = 24                      # per-batch row block, 8-aligned    = 24
WC = (W + 2) * C                 # lanes of one activation row       = 72
KWC = K * WC                     # merged contraction depth          = 216
WF = W * F                       # lanes of one conv-output row      = 128 (lane-dense)
NC_PAD = 128                     # padded class dim (lane-dense output)


def yoda_classifier_kernel(xp_ref, wk_ref, cb_ref, fcw_ref, fcb_ref, out_ref):
    """Fused conv3x3(same) + ReLU + global-avg-pool + linear head.

    xp_ref  : [B*HP_PAD, WC]   f32   zero-padded activation rows (NHWC packed in lanes)
    wk_ref  : [K*WC, W*F]      bf16  merged (kh-major) Toeplitz conv weights
    cb_ref  : [1, W*F]         f32   conv bias tiled over w
    fcw_ref : [W*F, NC_PAD]    bf16  fc weight tiled over w, pre-scaled by 1/(H*W), zero-padded
    fcb_ref : [1, NC_PAD]      f32   fc bias, zero-padded
    out_ref : [B, NC_PAD]      f32   padded logits
    """
    xp = xp_ref[...]                                    # one load of the whole activation [48, 72]

    # Build the merged matmul LHS [B*H, K*WC]: per batch, three kh-shifted row views
    # (static slices of a value; batch bases 0/24 are 8-sublane aligned) concatenated
    # along lanes, batches stacked along sublanes.
    parts = []
    for b in range(B):                                  # static unroll (B = 2)
        base = b * HP_PAD
        row_views = [xp[base + kh: base + kh + H, :] for kh in range(K)]   # each [H, WC]
        parts.append(jnp.concatenate(row_views, axis=1))                   # [H, K*WC]
    rows_all = jnp.concatenate(parts, axis=0).astype(jnp.bfloat16)         # [B*H, K*WC] bf16

    # One MXU push: [32, 216] x [216, 128] -> f32 accumulate.
    conv = jnp.dot(rows_all, wk_ref[...], preferred_element_type=jnp.float32)   # [B*H, W*F]
    hmap = jnp.maximum(conv + cb_ref[...], 0.0)                                 # bias + ReLU (VPU)

    # Global average pool: sublane (XLU) sum over h; the 1/(H*W) factor and the sum
    # over w are folded into fcw (tiled over w, pre-scaled).
    pooled = jnp.sum(hmap.reshape(B, H, WF), axis=1)                            # [B, W*F] f32

    logits = jnp.dot(pooled.astype(jnp.bfloat16), fcw_ref[...],
                     preferred_element_type=jnp.float32) + fcb_ref[...]         # [B, NC_PAD]
    out_ref[...] = logits.astype(out_ref.dtype)          # lane-dense (128-wide) store


def build_toeplitz_weights(conv_w):
    """conv_w [F, C, K, K] -> wk [K, (W+2)*C, W*F] with
    wk[kh][wp*C + c, w*F + f] = conv_w[f, c, kh, wp - w]  (zero if wp - w not in 0..K-1)."""
    blocks = []
    for kh in range(K):
        m = jnp.zeros((WC, WF), jnp.float32)
        for kw in range(K):
            sel = jnp.zeros((W + 2, W), jnp.float32)
            sel = sel.at[jnp.arange(W) + kw, jnp.arange(W)].set(1.0)
            m = m + jnp.kron(sel, conv_w[:, :, kh, kw].T)   # [(W+2)*C, W*F]
        blocks.append(m)
    return jnp.stack(blocks, axis=0)                        # [K, (W+2)*C, W*F]


def prepare_params(params):
    """Parameter-only preprocessing, done ONCE at init (hoisted out of forward)."""
    conv_w, conv_b, fc_w, fc_b = params
    wk = build_toeplitz_weights(conv_w).reshape(KWC, WF).astype(jnp.bfloat16)   # [216, 128]
    cb_row = jnp.tile(conv_b, (W,)).reshape(1, WF).astype(jnp.float32)          # [1, 128]
    fcw_big = jnp.pad(jnp.tile(fc_w, (W, 1)) / float(H * W),
                      ((0, 0), (0, NC_PAD - NUM_CLASSES))).astype(jnp.bfloat16)  # [128, 128]
    fcb_row = jnp.pad(fc_b.reshape(1, NUM_CLASSES),
                      ((0, 0), (0, NC_PAD - NUM_CLASSES))).astype(jnp.float32)   # [1, 128]
    return wk, cb_row, fcw_big, fcb_row


@jax.jit
def yoda_model_forward(x, prepared):
    """YODAModel.forward(x) == yoda_classifier(x), run as one Pallas kernel.
    Per-call glue is only pad + transpose + reshape of x (no im2col expansion,
    no weight-side work)."""
    wk, cb_row, fcw_big, fcb_row = prepared
    b, c, h, w = x.shape

    xp = jnp.pad(x, ((0, 0), (0, 0), (1, 1), (1, 1)))                        # [B, C, H+2, W+2]
    xrows = jnp.transpose(xp, (0, 2, 3, 1)).reshape(b, h + 2, (w + 2) * c)   # [B, 18, 72]
    xrows = jnp.pad(xrows, ((0, 0), (0, HP_PAD - (h + 2)), (0, 0)))          # [B, 24, 72] zero rows
    xp2d = xrows.reshape(b * HP_PAD, (w + 2) * c)                            # [48, 72]

    flops = 2 * (b * h) * KWC * WF + 2 * b * WF * NC_PAD
    bytes_accessed = (xp2d.size * 4 + wk.size * 2 + cb_row.size * 4 +
                      fcw_big.size * 2 + fcb_row.size * 4 + b * NC_PAD * 4)

    vmem = pl.BlockSpec(memory_space=pltpu.MemorySpace.VMEM)
    logits_pad = pl.pallas_call(
        yoda_classifier_kernel,
        out_shape=jax.ShapeDtypeStruct((b, NC_PAD), jnp.float32),
        in_specs=[vmem] * 5,
        out_specs=vmem,
        cost_estimate=pl.CostEstimate(flops=flops, transcendentals=0,
                                      bytes_accessed=bytes_accessed),
    )(xp2d, wk, cb_row, fcw_big, fcb_row)
    return logits_pad[:, :NUM_CLASSES]                   # drop zero-padded lanes


def init_params(key):
    k1, k2, k3, k4 = jax.random.split(key, 4)
    conv_w = jax.random.normal(k1, (F, C, K, K), jnp.float32) * 0.1   # PyTorch layout [F, C, kH, kW]
    conv_b = jax.random.normal(k2, (F,), jnp.float32) * 0.1
    fc_w = jax.random.normal(k3, (F, NUM_CLASSES), jnp.float32) * 0.1
    fc_b = jax.random.normal(k4, (NUM_CLASSES,), jnp.float32) * 0.1
    return conv_w, conv_b, fc_w, fc_b


if __name__ == "__main__":
    key = jax.random.PRNGKey(0)
    kx, kp = jax.random.split(key)
    x = jax.random.normal(kx, (B, C, H, W), jnp.float32)      # NCHW, like PyTorch
    params = init_params(kp)

    # One-time, hoisted parameter preprocessing (not on the per-call path).
    prepared = jax.block_until_ready(prepare_params(params))

    logits = jax.block_until_ready(yoda_model_forward(x, prepared))

    # Pure-JAX reference (conv -> relu -> GAP -> linear).  Conv operands are rounded
    # to bf16 exactly like the kernel does, with f32 accumulation (precision=HIGHEST).
    conv_w, conv_b, fc_w, fc_b = params
    x_bf = x.astype(jnp.bfloat16).astype(jnp.float32)
    cw_bf = conv_w.astype(jnp.bfloat16).astype(jnp.float32)
    ref_conv = jax.lax.conv_general_dilated(
        x_bf, cw_bf, window_strides=(1, 1), padding="SAME",
        dimension_numbers=("NCHW", "OIHW", "NCHW"),
        precision=jax.lax.Precision.HIGHEST) + conv_b[None, :, None, None]
    ref_h = jnp.maximum(ref_conv, 0.0)
    ref_pooled = ref_h.mean(axis=(2, 3))
    ref_logits = jnp.dot(ref_pooled, fc_w,
                         precision=jax.lax.Precision.HIGHEST) + fc_b

    assert logits.shape == (B, NUM_CLASSES)
    assert jnp.allclose(logits, ref_logits, atol=2e-3, rtol=2e-3), (
        float(jnp.max(jnp.abs(logits - ref_logits))))
    print("KERNEL_OK")
</pallas_src>

<mosaic_0001>
module attributes {stable_mosaic.version = 11 : i64} {
  func.func @yoda_classifier_kernel(%arg0: memref<48x72xf32, #tpu.memory_space<vmem>>, %arg1: memref<216x128xbf16, #tpu.memory_space<vmem>>, %arg2: memref<1x128xf32, #tpu.memory_space<vmem>>, %arg3: memref<128x128xbf16, #tpu.memory_space<vmem>>, %arg4: memref<1x128xf32, #tpu.memory_space<vmem>>, %arg5: memref<2x128xf32, #tpu.memory_space<vmem>>) attributes {dimension_semantics = [], scalar_prefetch = 0 : i64, scratch_operands = 0 : i64, tpu.core_type = #tpu.core_type<tc>} {
    %c0 = arith.constant 0 : index
    %c0_0 = arith.constant 0 : index
    %0 = vector.load %arg0[%c0, %c0_0] : memref<48x72xf32, #tpu.memory_space<vmem>>, vector<48x72xf32>
    %1 = vector.extract_strided_slice %0 {offsets = [0, 0], sizes = [16, 72], strides = [1, 1]} : vector<48x72xf32> to vector<16x72xf32>
    %2 = vector.extract_strided_slice %0 {offsets = [1, 0], sizes = [16, 72], strides = [1, 1]} : vector<48x72xf32> to vector<16x72xf32>
    %3 = vector.extract_strided_slice %0 {offsets = [2, 0], sizes = [16, 72], strides = [1, 1]} : vector<48x72xf32> to vector<16x72xf32>
    %4 = tpu.concatenate %1, %2, %3 in 1 : vector<16x72xf32>, vector<16x72xf32>, vector<16x72xf32> -> vector<16x216xf32>
    %5 = vector.extract_strided_slice %0 {offsets = [24, 0], sizes = [16, 72], strides = [1, 1]} : vector<48x72xf32> to vector<16x72xf32>
    %6 = vector.extract_strided_slice %0 {offsets = [25, 0], sizes = [16, 72], strides = [1, 1]} : vector<48x72xf32> to vector<16x72xf32>
    %7 = vector.extract_strided_slice %0 {offsets = [26, 0], sizes = [16, 72], strides = [1, 1]} : vector<48x72xf32> to vector<16x72xf32>
    %8 = tpu.concatenate %5, %6, %7 in 1 : vector<16x72xf32>, vector<16x72xf32>, vector<16x72xf32> -> vector<16x216xf32>
    %9 = tpu.concatenate %4, %8 in 0 : vector<16x216xf32>, vector<16x216xf32> -> vector<32x216xf32>
    %10 = arith.truncf %9 : vector<32x216xf32> to vector<32x216xbf16>
    %c0_1 = arith.constant 0 : index
    %c0_2 = arith.constant 0 : index
    %11 = vector.load %arg1[%c0_1, %c0_2] : memref<216x128xbf16, #tpu.memory_space<vmem>>, vector<216x128xbf16>
    %cst = arith.constant dense<0.000000e+00> : vector<32x128xf32>
    %12 = tpu.matmul %10, %11, %cst {dimension_numbers = #tpu.dot_dimension_numbers<[1], [0], [0], [1], [0, 0, 1, 1], [], []>} : vector<32x216xbf16>, vector<216x128xbf16>, vector<32x128xf32> -> vector<32x128xf32>
    %c0_3 = arith.constant 0 : index
    %c0_4 = arith.constant 0 : index
    %13 = vector.load %arg2[%c0_3, %c0_4] : memref<1x128xf32, #tpu.memory_space<vmem>>, vector<1x128xf32>
    %14 = vector.broadcast %13 : vector<1x128xf32> to vector<32x128xf32>
    %15 = arith.addf %12, %14 : vector<32x128xf32>
    %cst_5 = arith.constant 0.000000e+00 : f32
    %16 = vector.broadcast %cst_5 : f32 to vector<32x128xf32>
    %17 = arith.maximumf %15, %16 : vector<32x128xf32>
    %18 = vector.shape_cast %17 : vector<32x128xf32> to vector<2x16x128xf32>
    %cst_6 = arith.constant dense<0.000000e+00> : vector<2x128xf32>
    %19 = vector.multi_reduction <add>, %18, %cst_6 [1] : vector<2x16x128xf32> to vector<2x128xf32>
    %20 = arith.truncf %19 : vector<2x128xf32> to vector<2x128xbf16>
    %c0_7 = arith.constant 0 : index
    %c0_8 = arith.constant 0 : index
    %21 = vector.load %arg3[%c0_7, %c0_8] : memref<128x128xbf16, #tpu.memory_space<vmem>>, vector<128x128xbf16>
    %cst_9 = arith.constant dense<0.000000e+00> : vector<2x128xf32>
    %22 = tpu.matmul %20, %21, %cst_9 {dimension_numbers = #tpu.dot_dimension_numbers<[1], [0], [0], [1], [0, 0, 1, 1], [], []>} : vector<2x128xbf16>, vector<128x128xbf16>, vector<2x128xf32> -> vector<2x128xf32>
    %c0_10 = arith.constant 0 : index
    %c0_11 = arith.constant 0 : index
    %23 = vector.load %arg4[%c0_10, %c0_11] : memref<1x128xf32, #tpu.memory_space<vmem>>, vector<1x128xf32>
    %24 = vector.broadcast %23 : vector<1x128xf32> to vector<2x128xf32>
    %25 = arith.addf %22, %24 : vector<2x128xf32>
    %c0_12 = arith.constant 0 : index
    %c0_13 = arith.constant 0 : index
    %26 = vector.load %arg5[%c0_12, %c0_13] : memref<2x128xf32, #tpu.memory_space<vmem>>, vector<2x128xf32>
    tpu.vector_store %arg5[%c0_12, %c0_13], %25 {strides = array<i32>} : memref<2x128xf32, #tpu.memory_space<vmem>>, vector<2x128xf32>,
    return
  }
}

</mosaic_0001>

<llo_original>
// kernel: yoda_model_forward.1
$region0: #{yoda_model_forward.1}
  #allocation0 [shape = 'u32[]', space=smem, size = 0x4, offset = 0x4, fixed_abs, tag = 'smem constant byte address 0x4 - core index']
  #allocation1 [shape = 'u32[72,128]{1,0:T(1,128)}', space=vmem, size = 0x9000, scoped, tag = 'internal scratch']
  %s0 = inlined_call_operand.vmem [shape: f32[48,72], index: 0, kind: input, shape index: {}]
  %s1 = inlined_call_operand.vmem [shape: bf16[216,128], index: 1, kind: input, shape index: {}]
  %s2 = inlined_call_operand.vmem [shape: f32[1,128], index: 2, kind: input, shape index: {}]
  %s3 = inlined_call_operand.vmem [shape: bf16[128,128], index: 3, kind: input, shape index: {}]
  %s4 = inlined_call_operand.vmem [shape: f32[1,128], index: 4, kind: input, shape index: {}]
  %s5 = inlined_call_operand.hbm [shape: f32[2,128], index: 5, kind: output, shape index: {}]
  %s6 = sld [smem:[#allocation0]]
  $region30: #{yoda_model_forward.1} parent=0
    _
  %s8 = ssub.s32 1, %s6
  %s9 = scalar_select 0, %s8, %s6
  $region1: #{yoda_model_forward.1} parent=0
    #allocation2 [shape = 'u8[1024]{0}', space=vmem, size = 0x400, scoped, tag = 'output window, operand 0, single buffered']
    #allocation3 [shape = 's32[1]{0}', space=sflag, size = 0x4, scoped, tag = 'scoped memory for yoda_model_forward.1']
    %10 = vsyncpa [#allocation3], 0
    // Predicated region
    $region2: #{yoda_model_forward.1} parent=1 // pred_check
      _
    $region3: #{yoda_model_forward.1} parent=1 // pred_check_branch
      %12 = sbr.rel (0) target = $region5
    $region4: #{yoda_model_forward.1} parent=1 // pred_region
      _
    $region5: #{yoda_model_forward.1} parent=1 // pred_fallthru
      _
    // Predicated region
    $region6: #{yoda_model_forward.1} parent=1 // pred_check
      _
    $region7: #{yoda_model_forward.1} parent=1 // pred_check_branch
      %14 = sbr.rel (0) target = $region9
    $region8: #{yoda_model_forward.1} parent=1 // pred_region
      _
    $region9: #{yoda_model_forward.1} parent=1 // pred_fallthru
      _
    // Predicated region
    $region10: #{yoda_model_forward.1} parent=1 // pred_check
      _
    $region11: #{yoda_model_forward.1} parent=1 // pred_check_branch
      %16 = sbr.rel (0) target = $region13
    $region12: #{yoda_model_forward.1} parent=1 // pred_region
      _
    $region13: #{yoda_model_forward.1} parent=1 // pred_fallthru
      _
    // Predicated region
    $region14: #{yoda_model_forward.1} parent=1 // pred_check
      _
    $region15: #{yoda_model_forward.1} parent=1 // pred_check_branch
      %18 = sbr.rel (0) target = $region17
    $region16: #{yoda_model_forward.1} parent=1 // pred_region
      _
    $region17: #{yoda_model_forward.1} parent=1 // pred_fallthru
      _
    // Predicated region
    $region18: #{yoda_model_forward.1} parent=1 // pred_check
      _
    $region19: #{yoda_model_forward.1} parent=1 // pred_check_branch
      %20 = sbr.rel (0) target = $region21
    $region20: #{yoda_model_forward.1} parent=1 // pred_region
      _
    $region21: #{yoda_model_forward.1} parent=1 // pred_fallthru
      _
    %v22 = vld [vmem:[%s0] sm:$0xff]
    %v23 = vld [vmem:[%s0 + $0x8] sm:$0xff]
    %v24 = vld [vmem:[%s0 + $0x10] sm:$0xff]
    %v25 = vld [vmem:[%s0 + $0x18] sm:$0xff]
    %v26 = vld [vmem:[%s0 + $0x20] sm:$0xff]
    %v27 = vld [vmem:[%s0 + $0x28] sm:$0xff]
    %vm31 = vcmask 1046528
    %v32 = vrot.slane %v22, 1
    %v33 = vrot.slane %v23, 1
    %v34 = vsel %vm31, %v32, %v33
    %v35 = vrot.slane %v24, 1
    %v36 = vsel %vm31, %v33, %v35
    %37 = vrot.lane.b32.xlu0 %v34, 72
    %v38 = vpop.permute.xlu0 %37
    %39 = vrot.lane.b32.xlu0 %v36, 72
    %v40 = vpop.permute.xlu0 %39
    %vm43 = vcmask 1045504
    %v44 = vrot.slane %v22, 2
    %v45 = vrot.slane %v23, 2
    %v46 = vsel %vm43, %v44, %v45
    %v47 = vrot.slane %v24, 2
    %v48 = vsel %vm43, %v45, %v47
    %49 = vrot.lane.b32.xlu0 %v46, 16
    %v50 = vpop.permute.xlu0 %49
    %51 = vrot.lane.b32.xlu0 %v48, 16
    %v52 = vpop.permute.xlu0 %51
    %vm55 = vcmask 588800
    %v56 = vsel %vm55, %v22, %v38
    %v57 = vsel %vm55, %v23, %v40
    %vm58 = vcmask 130048
    %v59 = vsel %vm58, %v38, %v50
    %v60 = vsel %vm58, %v40, %v52
    %v64 = vrot.slane %v25, 1
    %v65 = vrot.slane %v26, 1
    %v66 = vsel %vm31, %v64, %v65
    %v67 = vrot.slane %v27, 1
    %v68 = vsel %vm31, %v65, %v67
    %69 = vrot.lane.b32.xlu0 %v66, 72
    %v70 = vpop.permute.xlu0 %69
    %71 = vrot.lane.b32.xlu0 %v68, 72
    %v72 = vpop.permute.xlu0 %71
    %v75 = vrot.slane %v25, 2
    %v76 = vrot.slane %v26, 2
    %v77 = vsel %vm43, %v75, %v76
    %v78 = vrot.slane %v27, 2
    %v79 = vsel %vm43, %v76, %v78
    %80 = vrot.lane.b32.xlu0 %v77, 16
    %v81 = vpop.permute.xlu0 %80
    %82 = vrot.lane.b32.xlu0 %v79, 16
    %v83 = vpop.permute.xlu0 %82
    %v86 = vsel %vm55, %v25, %v70
    %v87 = vsel %vm55, %v26, %v72
    %v88 = vsel %vm58, %v70, %v81
    %v89 = vsel %vm58, %v72, %v83
    %v90 = vpack.c.bf16 %v57, %v56
    %v91 = vpack.c.bf16 %v60, %v59
    %v92 = vpack.c.bf16 %v87, %v86
    %v93 = vpack.c.bf16 %v89, %v88
    %v94 = vld [vmem:[%s1] sm:$0xf]
    %v95 = vld [vmem:[%s1 + $0x4] sm:$0xf]
    %v96 = vld [vmem:[%s1 + $0x8] sm:$0xf]
    %v97 = vld [vmem:[%s1 + $0xc] sm:$0xf]
    %v98 = vld [vmem:[%s1 + $0x10] sm:$0xf]
    %v99 = vld [vmem:[%s1 + $0x14] sm:$0xf]
    %v100 = vld [vmem:[%s1 + $0x18] sm:$0xf]
    %v101 = vld [vmem:[%s1 + $0x1c] sm:$0xf]
    %v102 = vld [vmem:[%s1 + $0x20] sm:$0xf]
    %v103 = vld [vmem:[%s1 + $0x24] sm:$0xf]
    %v104 = vld [vmem:[%s1 + $0x28] sm:$0xf]
    %v105 = vld [vmem:[%s1 + $0x2c] sm:$0xf]
    %v106 = vld [vmem:[%s1 + $0x30] sm:$0xf]
    %v107 = vld [vmem:[%s1 + $0x34] sm:$0xf]
    %v108 = vld [vmem:[%s1 + $0x38] sm:$0xf]
    %v109 = vld [vmem:[%s1 + $0x3c] sm:$0xf]
    %v110 = vld [vmem:[%s1 + $0x40] sm:$0xf]
    %v111 = vld [vmem:[%s1 + $0x44] sm:$0xf]
    %v112 = vld [vmem:[%s1 + $0x48] sm:$0xf]
    %v113 = vld [vmem:[%s1 + $0x4c] sm:$0xf]
    %v114 = vld [vmem:[%s1 + $0x50] sm:$0xf]
    %v115 = vld [vmem:[%s1 + $0x54] sm:$0xf]
    %v116 = vld [vmem:[%s1 + $0x58] sm:$0xf]
    %v117 = vld [vmem:[%s1 + $0x5c] sm:$0xf]
    %v118 = vld [vmem:[%s1 + $0x60] sm:$0xf]
    %v119 = vld [vmem:[%s1 + $0x64] sm:$0xf]
    %v120 = vld [vmem:[%s1 + $0x68] sm:$0xf]
    %v121 = vld [vmem:[%s2] sm:$0x1]
    %v123 = vperm.slane %v121, 0
    %v152 = vunpack.c.l.b16 %v94
    %v153 = vunpack.c.l.b16 %v95
    %v154 = vunpack.c.l.b16 %v96
    %v155 = vunpack.c.l.b16 %v97
    %v156 = vunpack.c.l.b16 %v98
    %v157 = vunpack.c.l.b16 %v99
    %v158 = vunpack.c.l.b16 %v100
    %v159 = vunpack.c.l.b16 %v101
    %v160 = vunpack.c.l.b16 %v102
    %v161 = vunpack.c.l.b16 %v103
    %v162 = vunpack.c.l.b16 %v104
    %v163 = vunpack.c.l.b16 %v105
    %v164 = vunpack.c.l.b16 %v106
    %v165 = vunpack.c.l.b16 %v107
    %v166 = vunpack.c.l.b16 %v108
    %v167 = vunpack.c.l.b16 %v109
    %v168 = vunpack.c.l.b16 %v110
    %v169 = vunpack.c.l.b16 %v111
    %v170 = vunpack.c.l.b16 %v112
    %v171 = vunpack.c.l.b16 %v113
    %v172 = vunpack.c.l.b16 %v114
    %v173 = vunpack.c.l.b16 %v115
    %v174 = vunpack.c.l.b16 %v116
    %v175 = vunpack.c.l.b16 %v117
    %v176 = vunpack.c.l.b16 %v118
    %v177 = vunpack.c.l.b16 %v119
    %v178 = vunpack.c.l.b16 %v120
    %v179 = vpack.c.b16 %v153, %v152
    %v180 = vpack.c.b16 %v155, %v154
    %v181 = vpack.c.b16 %v157, %v156
    %v182 = vpack.c.b16 %v159, %v158
    %v183 = vpack.c.b16 %v161, %v160
    %v184 = vpack.c.b16 %v163, %v162
    %v185 = vpack.c.b16 %v165, %v164
    %v186 = vpack.c.b16 %v167, %v166
    %v187 = vpack.c.b16 %v169, %v168
    %v188 = vpack.c.b16 %v171, %v170
    %v189 = vpack.c.b16 %v173, %v172
    %v190 = vpack.c.b16 %v175, %v174
    %v191 = vpack.c.b16 %v177, %v176
    %v192 = vpack.c.b16 %v178, %v178
    %vm206 = vcmask 719872
    %v208 = vsel %vm206, %v91, 0
    %v211 = vsel %vm206, %v93, 0
    %vm213 = vcmask 1043456
    %v215 = vsel %vm213, %v192, 0
    %217 = vmatpush.bf16.msra.mxu0 %v186
    %218 = vmatpush.bf16.msra.mxu0 %v185
    %219 = vmatpush.bf16.msra.mxu0 %v184
    %220 = vmatpush.bf16.msra.mxu0 %v183
    %221 = vmatpush.bf16.msra.mxu0 %v182
    %222 = vmatpush.bf16.msra.mxu0 %v181
    %223 = vmatpush.bf16.msra.mxu0 %v180
    %224 = vmatpush.bf16.msra.mxu0 %v179
    %225 = vmatmul.bf16.gmra.mxu0 %v90
    %v226 = vpop.f32.mrf.mxu0
    %v227 = vadd.f32 %v123, %v226
    %v228 = vpop.f32.mrf.mxu0
    %v229 = vadd.f32 %v123, %v228
    %230 = vmatmul.bf16.gmra.mxu0 %v92
    %v231 = vpop.f32.mrf.mxu0
    %v232 = vadd.f32 %v123, %v231
    %v233 = vpop.f32.mrf.mxu0
    %v234 = vadd.f32 %v123, %v233
    %235 = vdwg.mxu0
    %236 = vmatpush.bf16.msra.mxu0 0
    %237 = vmatpush.bf16.msra.mxu0 0
    %238 = vmatpush.bf16.msra.mxu0 %v215
    %239 = vmatpush.bf16.msra.mxu0 %v191
    %240 = vmatpush.bf16.msra.mxu0 %v190
    %241 = vmatpush.bf16.msra.mxu0 %v189
    %242 = vmatpush.bf16.msra.mxu0 %v188
    %243 = vmatpush.bf16.msra.mxu0 %v187
    %244 = vmatmul.bf16.gmra.mxu0 %v208
    %v245 = vpop.f32.mrf.mxu0
    %v246 = vadd.f32 %v227, %v245
    %v247 = vpop.f32.mrf.mxu0
    %v248 = vadd.f32 %v229, %v247
    %249 = vmatmul.bf16.gmra.mxu0 %v211
    %v250 = vpop.f32.mrf.mxu0
    %v251 = vadd.f32 %v232, %v250
    %v252 = vpop.f32.mrf.mxu0
    %v253 = vadd.f32 %v234, %v252
    %254 = vdwg.mxu0
    %v255 = vmax.f32 %v246, 0.0
    %v256 = vmax.f32 %v248, 0.0
    %v257 = vmax.f32 %v251, 0.0
    %v258 = vmax.f32 %v253, 0.0
    %v259 = vadd.f32 %v255, %v256
    %v260 = vrot.slane %v259, 4
    %v261 = vadd.f32 %v259, %v260
    %v262 = vrot.slane %v261, 2
    %v263 = vadd.f32 %v261, %v262
    %v264 = vrot.slane %v263, 1
    %v265 = vadd.f32 %v263, %v264
    %v266 = vadd.f32 %v257, %v258
    %v267 = vrot.slane %v266, 4
    %v268 = vadd.f32 %v266, %v267
    %v269 = vrot.slane %v268, 2
    %v270 = vadd.f32 %v268, %v269
    %v271 = vrot.slane %v270, 1
    %v272 = vadd.f32 %v270, %v271
    %v273 = vpack.c.bf16 %v265, %v265
    %v274 = vpack.c.bf16 %v272, %v272
    %v275 = vld [vmem:[%s3] sm:$0xf]
    %v276 = vld [vmem:[%s3 + $0x4] sm:$0xf]
    %v277 = vld [vmem:[%s3 + $0x8] sm:$0xf]
    %v278 = vld [vmem:[%s3 + $0xc] sm:$0xf]
    %v279 = vld [vmem:[%s3 + $0x10] sm:$0xf]
    %v280 = vld [vmem:[%s3 + $0x14] sm:$0xf]
    %v281 = vld [vmem:[%s3 + $0x18] sm:$0xf]
    %v282 = vld [vmem:[%s3 + $0x1c] sm:$0xf]
    %v283 = vld [vmem:[%s3 + $0x20] sm:$0xf]
    %v284 = vld [vmem:[%s3 + $0x24] sm:$0xf]
    %v285 = vld [vmem:[%s3 + $0x28] sm:$0xf]
    %v286 = vld [vmem:[%s3 + $0x2c] sm:$0xf]
    %v287 = vld [vmem:[%s3 + $0x30] sm:$0xf]
    %v288 = vld [vmem:[%s3 + $0x34] sm:$0xf]
    %v289 = vld [vmem:[%s3 + $0x38] sm:$0xf]
    %v290 = vld [vmem:[%s3 + $0x3c] sm:$0xf]
    %v291 = vld [vmem:[%s4] sm:$0x1]
    %v293 = vperm.slane %v291, 0
    %v297 = vunpack.c.l.b16 %v273
    %v298 = vunpack.c.l.b16 %v274
    %vm299 = vcmask 1041409
    %v300 = vsel %vm299, %v298, %v297
    %v301 = vpack.c.b16 %v300, %v300
    %v319 = vunpack.c.l.b16 %v275
    %v320 = vunpack.c.l.b16 %v276
    %v321 = vunpack.c.l.b16 %v277
    %v322 = vunpack.c.l.b16 %v278
    %v323 = vunpack.c.l.b16 %v279
    %v324 = vunpack.c.l.b16 %v280
    %v325 = vunpack.c.l.b16 %v281
    %v326 = vunpack.c.l.b16 %v282
    %v327 = vunpack.c.l.b16 %v283
    %v328 = vunpack.c.l.b16 %v284
    %v329 = vunpack.c.l.b16 %v285
    %v330 = vunpack.c.l.b16 %v286
    %v331 = vunpack.c.l.b16 %v287
    %v332 = vunpack.c.l.b16 %v288
    %v333 = vunpack.c.l.b16 %v289
    %v334 = vunpack.c.l.b16 %v290
    %v335 = vpack.c.b16 %v320, %v319
    %v336 = vpack.c.b16 %v322, %v321
    %v337 = vpack.c.b16 %v324, %v323
    %v338 = vpack.c.b16 %v326, %v325
    %v339 = vpack.c.b16 %v328, %v327
    %v340 = vpack.c.b16 %v330, %v329
    %v341 = vpack.c.b16 %v332, %v331
    %v342 = vpack.c.b16 %v334, %v333
    %351 = vmatpush.bf16.msra.mxu0 %v342
    %352 = vmatpush.bf16.msra.mxu0 %v341
    %353 = vmatpush.bf16.msra.mxu0 %v340
    %354 = vmatpush.bf16.msra.mxu0 %v339
    %355 = vmatpush.bf16.msra.mxu0 %v338
    %356 = vmatpush.bf16.msra.mxu0 %v337
    %357 = vmatpush.bf16.msra.mxu0 %v336
    %358 = vmatpush.bf16.msra.mxu0 %v335
    %359 = vmatmul.bf16.gmra.mxu0 %v301
    %v360 = vpop.f32.mrf.mxu0
    %v361 = vadd.f32 %v293, %v360
    %v362 = vpop.f32.mrf.mxu0
    %363 = vdwg.mxu0
    %364 = vst [vmem:[#allocation2] sm:$0x3] %v361
    // Predicated region
    $region22: #{yoda_model_forward.1} parent=1 // pred_check
      _
    $region23: #{yoda_model_forward.1} parent=1 // pred_check_branch
      %366 = sbr.rel (0) target = $region25
    $region24: #{yoda_model_forward.1} parent=1 // pred_region
      %368 = vsyncadd [#allocation3], 0
      %s370 = sshll.u32 [#allocation2], 4
      %s371 = int_to_ptr.vmem [resolvable:$true] %s370
      %s372 = sshll.u32 %s5, 4
      %s373 = int_to_ptr.hbm [resolvable:$true] %s372
      %375 = dma.vmem_to_hbm [thread:$0]  %s371, 32, %s373, [#allocation3]
    $region25: #{yoda_model_forward.1} parent=1 // pred_fallthru
      _
    // Predicated region
    $region26: #{yoda_model_forward.1} parent=1 // pred_check
      _
    $region27: #{yoda_model_forward.1} parent=1 // pred_check_branch
      %377 = sbr.rel (0) target = $region29
    $region28: #{yoda_model_forward.1} parent=1 // pred_region
      %379 = dma.done [#allocation3], 32
    $region29: #{yoda_model_forward.1} parent=1 // pred_fallthru
      _
    %380 = vsyncpa [#allocation3], 1

</llo_original>
